<compile_context>
chip_gen: v5e
topology: v5e:2x2
jax: 0.10.0
libtpu: 0.0.40
codegen_flags: <defaults>
</compile_context>

<pallas_src>
import numpy as np
import jax
import jax.numpy as jnp
from jax.experimental import pallas as pl
from jax.experimental.pallas import tpu as pltpu


def _round_up(a: int, b: int) -> int:
    return ((a + b - 1) // b) * b


def _cb_loss_kernel(logits_ref, xl_ref, w_ref, out_ref):
    """One batch tile: accumulate weighted-BCE partial sums into out_ref (8, Cp)."""
    i = pl.program_id(1)

    @pl.when(i == 0)
    def _init():
        out_ref[...] = jnp.zeros_like(out_ref)

    x = logits_ref[...].astype(jnp.float32)     # (tb, Cp)  padded cols are -1e30
    xl = xl_ref[...].astype(jnp.float32)        # (tb, 1)   logit at the label
    w = w_ref[...].astype(jnp.float32)          # (tb, 1)   0 for padded rows

    # Row-wise softmax statistics: 1 exp per element, 1 log per row.
    m = jnp.max(x, axis=1, keepdims=True)
    e = jnp.exp(x - m)
    s = jnp.sum(e, axis=1, keepdims=True)
    logs = jnp.log(s)

    # log(1 - p_c) = log(s - e_c) - log(s), clamped at -100 like F.binary_cross_entropy.
    # Padded classes have e_c == 0 exactly, so their term is exactly 0.
    log1mp = jnp.maximum(jnp.log(s - e) - logs, -100.0)           # (tb, Cp)

    # Label-column terms, per row (no one-hot / gather over C inside the kernel).
    e_l = jnp.exp(xl - m)
    logp_l = jnp.maximum(xl - m - logs, -100.0)                   # log p_label
    log1mp_l = jnp.maximum(jnp.log(s - e_l) - logs, -100.0)       # log(1 - p_label)

    # Weighted BCE summed over a row:
    #   w * ( -logp_l - sum_c log1mp_c + log1mp_l )
    # Fold rows in groups of 8 (tile-aligned reshape): keeps both lanes and
    # sublanes resident, accumulation is a full unmasked (8, Cp) store.
    tb, cp = log1mp.shape
    body = (-w * log1mp).reshape(tb // 8, 8, cp).sum(axis=0)                  # (8, Cp)
    row_term = (w * (log1mp_l - logp_l)).reshape(tb // 8, 8, 1).sum(axis=0)   # (8, 1)
    col = jax.lax.broadcasted_iota(jnp.int32, body.shape, 1)
    out_ref[...] += body + jnp.where(col == 0, row_term, jnp.float32(0.0))


def cb_loss_softmax(logits, labels, class_weights, *, tb=512):
    """Class-balanced softmax-BCE loss (mean over the real N*C elements)."""
    N, C = logits.shape
    C_pad = _round_up(C, 128)                            # lane-dense class axis

    # Batch tiling: tb clamped to the (8-rounded) batch; batch padded to a
    # whole number of tiles with zero-weight rows.
    tb_eff = max(8, min(_round_up(tb, 8), _round_up(N, 8)))
    num_tiles = -(-N // tb_eff)
    P = 2 if (num_tiles >= 2 and num_tiles % 2 == 0) else 1   # v7x: one slab per TC
    n_inner = num_tiles // P
    N_pad = num_tiles * tb_eff

    labels = labels.astype(jnp.int32)
    # Tiny XLA gathers outside the kernel: label logit and per-sample weight.
    xl = jnp.take_along_axis(logits, labels[:, None], axis=1).astype(jnp.float32)
    w = class_weights.astype(jnp.float32)[labels][:, None]

    # Pad classes with a huge negative (exp underflows to exactly 0, so padded
    # lanes contribute exactly 0), then pad rows with zeros + zero weight.
    logits_p = jnp.pad(logits, ((0, 0), (0, C_pad - C)), constant_values=-1e30)
    logits_p = jnp.pad(logits_p, ((0, N_pad - N), (0, 0)))
    xl_p = jnp.pad(xl, ((0, N_pad - N), (0, 0)))
    w_p = jnp.pad(w, ((0, N_pad - N), (0, 0)))

    partials = pl.pallas_call(
        _cb_loss_kernel,
        out_shape=jax.ShapeDtypeStruct((P * 8, C_pad), jnp.float32),
        grid_spec=pltpu.PrefetchScalarGridSpec(
            num_scalar_prefetch=0,
            grid=(P, n_inner),
            in_specs=[
                pl.BlockSpec((tb_eff, C_pad), lambda p, i: (p * n_inner + i, 0)),
                pl.BlockSpec((tb_eff, 1), lambda p, i: (p * n_inner + i, 0)),
                pl.BlockSpec((tb_eff, 1), lambda p, i: (p * n_inner + i, 0)),
            ],
            out_specs=pl.BlockSpec((8, C_pad), lambda p, i: (p, 0)),
        ),
        compiler_params=pltpu.CompilerParams(
            dimension_semantics=("parallel", "arbitrary")),
    )(logits_p, xl_p, w_p)

    # Mean reduction over the REAL N*C elements (F.binary_cross_entropy default).
    return jnp.sum(partials) / jnp.float32(N * C)


def make_class_weights(samples_per_cls, beta, no_of_classes):
    """Host-side glue identical to the numpy portion of CBLoss.forward."""
    effective_num = 1.0 - np.power(beta, samples_per_cls)
    weights = (1.0 - beta) / np.array(effective_num)
    weights = weights / np.sum(weights) * no_of_classes
    return jnp.asarray(weights, dtype=jnp.float32)


def cb_loss_reference(logits, labels, class_weights):
    """Pure-JAX mirror of the PyTorch 'softmax' branch, for checking."""
    N, C = logits.shape
    onehot = jax.nn.one_hot(labels, C, dtype=jnp.float32)
    w = jnp.sum(class_weights[None, :] * onehot, axis=1, keepdims=True)
    w = jnp.broadcast_to(w, (N, C))
    p = jax.nn.softmax(logits.astype(jnp.float32), axis=1)
    logp = jnp.maximum(jnp.log(p), -100.0)
    log1mp = jnp.maximum(jnp.log(1.0 - p), -100.0)
    bce = -(onehot * logp + (1.0 - onehot) * log1mp)
    return jnp.mean(w * bce)


# TODO(synk): loss_type='focal' and 'sigmoid' branches of CBLoss are not implemented
#             (the module's default 'softmax' branch is what this kernel covers).

if __name__ == "__main__":
    NO_OF_CLASSES = 1000   # hardcoded in the PyTorch module
    BETA = 0.9999

    # Deterministic synthetic long-tailed class counts (stands in for prior_txt).
    samples_per_cls = np.floor(1000.0 * np.power(0.995, np.arange(NO_OF_CLASSES))) + 1.0
    class_weights = make_class_weights(samples_per_cls, BETA, NO_OF_CLASSES)

    key = jax.random.PRNGKey(0)
    k1, k2, k3, k4 = jax.random.split(key, 4)

    # --- small case: single tile, class padding 1000 -> 1024 ---
    N = 32
    logits = jax.random.normal(k1, (N, NO_OF_CLASSES), dtype=jnp.float32)
    labels = jax.random.randint(k2, (N,), 0, NO_OF_CLASSES, dtype=jnp.int32)
    loss = jax.block_until_ready(cb_loss_softmax(logits, labels, class_weights))
    ref = jax.block_until_ready(cb_loss_reference(logits, labels, class_weights))
    np.testing.assert_allclose(np.asarray(loss), np.asarray(ref), rtol=1e-4, atol=1e-5)

    # --- larger case: row padding, multi-step accumulation, 2-slab parallel axis ---
    N2 = 1000   # not a multiple of tb -> exercises zero-weight row padding
    logits2 = jax.random.normal(k3, (N2, NO_OF_CLASSES), dtype=jnp.float32)
    labels2 = jax.random.randint(k4, (N2,), 0, NO_OF_CLASSES, dtype=jnp.int32)
    loss2 = jax.block_until_ready(cb_loss_softmax(logits2, labels2, class_weights, tb=256))
    ref2 = jax.block_until_ready(cb_loss_reference(logits2, labels2, class_weights))
    np.testing.assert_allclose(np.asarray(loss2), np.asarray(ref2), rtol=1e-4, atol=1e-5)

    print("KERNEL_OK")
</pallas_src>

<mosaic_0001>
module attributes {stable_mosaic.version = 11 : i64} {
  func.func @_cb_loss_kernel(%arg0: i32, %arg1: i32, %arg2: memref<32x1024xf32, #tpu.memory_space<vmem>>, %arg3: memref<32x1xf32, #tpu.memory_space<vmem>>, %arg4: memref<32x1xf32, #tpu.memory_space<vmem>>, %arg5: memref<8x1024xf32, #tpu.memory_space<vmem>>) attributes {dimension_semantics = [#tpu.dimension_semantics<parallel>, #tpu.dimension_semantics<arbitrary>], iteration_bounds = array<i64: 1, 1>, scalar_prefetch = 0 : i64, scratch_operands = 0 : i64, tpu.core_type = #tpu.core_type<tc>, window_params = [{transform_indices = @transform_0, window_bounds = array<i64: 32, 1024>}, {transform_indices = @transform_1, window_bounds = array<i64: 32, 1>}, {transform_indices = @transform_2, window_bounds = array<i64: 32, 1>}, {transform_indices = @transform_3, window_bounds = array<i64: 8, 1024>}]} {
    %c0_i32 = arith.constant 0 : i32
    %0 = arith.cmpi eq, %arg1, %c0_i32 : i32
    %1 = arith.extui %0 : i1 to i32
    %c0_i32_0 = arith.constant 0 : i32
    %2 = arith.cmpi ne, %1, %c0_i32_0 : i32
    scf.if %2 {
      %cst_19 = arith.constant 0.000000e+00 : f32
      %53 = vector.broadcast %cst_19 : f32 to vector<8x1024xf32>
      %c0_20 = arith.constant 0 : index
      %c0_21 = arith.constant 0 : index
      %54 = vector.load %arg5[%c0_20, %c0_21] : memref<8x1024xf32, #tpu.memory_space<vmem>>, vector<8x1024xf32>
      tpu.vector_store %arg5[%c0_20, %c0_21], %53 {strides = array<i32>} : memref<8x1024xf32, #tpu.memory_space<vmem>>, vector<8x1024xf32>,
    } else {
    }
    %c0 = arith.constant 0 : index
    %c0_1 = arith.constant 0 : index
    %3 = vector.load %arg2[%c0, %c0_1] : memref<32x1024xf32, #tpu.memory_space<vmem>>, vector<32x1024xf32>
    %c0_2 = arith.constant 0 : index
    %c0_3 = arith.constant 0 : index
    %4 = vector.load %arg3[%c0_2, %c0_3] : memref<32x1xf32, #tpu.memory_space<vmem>>, vector<32x1xf32>
    %c0_4 = arith.constant 0 : index
    %c0_5 = arith.constant 0 : index
    %5 = vector.load %arg4[%c0_4, %c0_5] : memref<32x1xf32, #tpu.memory_space<vmem>>, vector<32x1xf32>
    %cst = arith.constant dense<0xFF800000> : vector<32xf32>
    %6 = vector.multi_reduction <maximumf>, %3, %cst [1] : vector<32x1024xf32> to vector<32xf32>
    %7 = vector.shape_cast %6 : vector<32xf32> to vector<32x1xf32>
    %8 = vector.broadcast %7 : vector<32x1xf32> to vector<32x1024xf32>
    %9 = arith.subf %3, %8 : vector<32x1024xf32>
    %10 = math.exp %9 : vector<32x1024xf32>
    %cst_6 = arith.constant dense<0.000000e+00> : vector<32xf32>
    %11 = vector.multi_reduction <add>, %10, %cst_6 [1] : vector<32x1024xf32> to vector<32xf32>
    %12 = vector.shape_cast %11 : vector<32xf32> to vector<32x1xf32>
    %13 = math.log %12 : vector<32x1xf32>
    %14 = vector.broadcast %12 : vector<32x1xf32> to vector<32x1024xf32>
    %15 = arith.subf %14, %10 : vector<32x1024xf32>
    %16 = math.log %15 : vector<32x1024xf32>
    %17 = vector.broadcast %13 : vector<32x1xf32> to vector<32x1024xf32>
    %18 = arith.subf %16, %17 : vector<32x1024xf32>
    %cst_7 = arith.constant -1.000000e+02 : f32
    %19 = vector.broadcast %cst_7 : f32 to vector<32x1024xf32>
    %20 = arith.maximumf %18, %19 : vector<32x1024xf32>
    %21 = arith.subf %4, %7 : vector<32x1xf32>
    %22 = math.exp %21 : vector<32x1xf32>
    %23 = arith.subf %4, %7 : vector<32x1xf32>
    %24 = arith.subf %23, %13 : vector<32x1xf32>
    %cst_8 = arith.constant -1.000000e+02 : f32
    %25 = vector.broadcast %cst_8 : f32 to vector<32x1xf32>
    %26 = arith.maximumf %24, %25 : vector<32x1xf32>
    %27 = arith.subf %12, %22 : vector<32x1xf32>
    %28 = math.log %27 : vector<32x1xf32>
    %29 = arith.subf %28, %13 : vector<32x1xf32>
    %cst_9 = arith.constant -1.000000e+02 : f32
    %30 = vector.broadcast %cst_9 : f32 to vector<32x1xf32>
    %31 = arith.maximumf %29, %30 : vector<32x1xf32>
    %cst_10 = arith.constant 0.000000e+00 : f32
    %32 = vector.broadcast %cst_10 : f32 to vector<32x1xf32>
    %33 = arith.subf %32, %5 : vector<32x1xf32>
    %34 = vector.broadcast %33 : vector<32x1xf32> to vector<32x1024xf32>
    %35 = arith.mulf %34, %20 : vector<32x1024xf32>
    %36 = vector.shape_cast %35 : vector<32x1024xf32> to vector<4x8x1024xf32>
    %cst_11 = arith.constant dense<0.000000e+00> : vector<8x1024xf32>
    %37 = vector.multi_reduction <add>, %36, %cst_11 [0] : vector<4x8x1024xf32> to vector<8x1024xf32>
    %38 = arith.subf %31, %26 : vector<32x1xf32>
    %39 = arith.mulf %5, %38 : vector<32x1xf32>
    %40 = vector.shape_cast %39 : vector<32x1xf32> to vector<4x8x1xf32>
    %cst_12 = arith.constant dense<0.000000e+00> : vector<8x1xf32>
    %41 = vector.multi_reduction <add>, %40, %cst_12 [0] : vector<4x8x1xf32> to vector<8x1xf32>
    %42 = tpu.iota {dimensions = array<i32: 1>} : vector<8x1024xi32>
    %c0_13 = arith.constant 0 : index
    %c0_14 = arith.constant 0 : index
    %43 = vector.load %arg5[%c0_13, %c0_14] : memref<8x1024xf32, #tpu.memory_space<vmem>>, vector<8x1024xf32>
    %c0_i32_15 = arith.constant 0 : i32
    %44 = vector.broadcast %c0_i32_15 : i32 to vector<8x1024xi32>
    %45 = arith.cmpi eq, %42, %44 : vector<8x1024xi32>
    %cst_16 = arith.constant 0.000000e+00 : f32
    %46 = vector.shape_cast %41 : vector<8x1xf32> to vector<8x1xf32>
    %47 = vector.broadcast %46 : vector<8x1xf32> to vector<8x1024xf32>
    %48 = vector.broadcast %cst_16 : f32 to vector<8x1024xf32>
    %49 = arith.select %45, %47, %48 : vector<8x1024xi1>, vector<8x1024xf32>
    %50 = arith.addf %37, %49 : vector<8x1024xf32>
    %51 = arith.addf %43, %50 : vector<8x1024xf32>
    %c0_17 = arith.constant 0 : index
    %c0_18 = arith.constant 0 : index
    %52 = vector.load %arg5[%c0_17, %c0_18] : memref<8x1024xf32, #tpu.memory_space<vmem>>, vector<8x1024xf32>
    tpu.vector_store %arg5[%c0_17, %c0_18], %51 {strides = array<i32>} : memref<8x1024xf32, #tpu.memory_space<vmem>>, vector<8x1024xf32>,
    return
  }
  func.func @transform_0(%arg0: i32, %arg1: i32) -> (i32, i32) {
    %c1_i32 = arith.constant 1 : i32
    %0 = arith.muli %arg0, %c1_i32 : i32
    %1 = arith.addi %0, %arg1 : i32
    %c0_i32 = arith.constant 0 : i32
    %c0_i32_0 = arith.constant 0 : i32
    return %1, %c0_i32 : i32, i32
  }
  func.func @transform_1(%arg0: i32, %arg1: i32) -> (i32, i32) {
    %c1_i32 = arith.constant 1 : i32
    %0 = arith.muli %arg0, %c1_i32 : i32
    %1 = arith.addi %0, %arg1 : i32
    %c0_i32 = arith.constant 0 : i32
    %c0_i32_0 = arith.constant 0 : i32
    return %1, %c0_i32 : i32, i32
  }
  func.func @transform_2(%arg0: i32, %arg1: i32) -> (i32, i32) {
    %c1_i32 = arith.constant 1 : i32
    %0 = arith.muli %arg0, %c1_i32 : i32
    %1 = arith.addi %0, %arg1 : i32
    %c0_i32 = arith.constant 0 : i32
    %c0_i32_0 = arith.constant 0 : i32
    return %1, %c0_i32 : i32, i32
  }
  func.func @transform_3(%arg0: i32, %arg1: i32) -> (i32, i32) {
    %c0_i32 = arith.constant 0 : i32
    %c0_i32_0 = arith.constant 0 : i32
    return %arg0, %c0_i32 : i32, i32
  }
}

</mosaic_0001>

<llo_original>
// kernel: tpu_custom_call.1
$region0: #{tpu_custom_call.1}
  #allocation0 [shape = 'u32[]', space=smem, size = 0x4, offset = 0x4, fixed_abs, tag = 'smem constant byte address 0x4 - core index']
  #allocation1 [shape = 'u32[72,128]{1,0:T(1,128)}', space=vmem, size = 0x9000, scoped, tag = 'internal scratch']
  %s0 = inlined_call_operand.hbm [shape: f32[32,1024], index: 0, kind: input, shape index: {}]
  %s1 = inlined_call_operand.vmem [shape: f32[32,1], index: 1, kind: input, shape index: {}]
  %s2 = inlined_call_operand.vmem [shape: f32[32,1], index: 2, kind: input, shape index: {}]
  %s3 = inlined_call_operand.hbm [shape: f32[8,1024], index: 3, kind: output, shape index: {}]
  %s4 = sld [smem:[#allocation0]]
  $region30: #{tpu_custom_call.1} parent=0
    _
  %s6 = ssub.s32 1, %s4
  %s7 = scalar_select 0, %s6, %s4
  $region1: #{tpu_custom_call.1} parent=0
    #allocation2 [shape = 'u8[131072]{0}', space=vmem, size = 0x20000, scoped, tag = 'input window, operand 0, single buffered']
    #allocation3 [shape = 's32[1]{0}', space=sflag, size = 0x4, scoped, tag = 'scoped memory for tpu_custom_call.1']
    #allocation4 [shape = 's32[1]{0}', space=sflag, size = 0x4, scoped, tag = 'scoped memory for tpu_custom_call.1']
    #allocation5 [shape = 'u8[32768]{0}', space=vmem, size = 0x8000, scoped, tag = 'output window, operand 0, single buffered']
    %8 = vsyncpa [#allocation3], 0
    %9 = vsyncpa [#allocation4], 0
    // Predicated region
    $region2: #{tpu_custom_call.1} parent=1 // pred_check
      _
    $region3: #{tpu_custom_call.1} parent=1 // pred_check_branch
      %11 = sbr.rel (0) target = $region5
    $region4: #{tpu_custom_call.1} parent=1 // pred_region
      %s12 = sadd.s32 0, 0
      %s13 = smul.u32 4, %s12
      %15 = vsyncadd [#allocation3], 0
      %s16 = smul.addr %s13, 8
      %s17 = smul.addr %s16, 8
      %s18 = scalar_lea.hbm %s0, %s17
      %s19 = sshll.u32 %s18, 4
      %s20 = int_to_ptr.hbm [resolvable:$true] %s19
      %s21 = sshll.u32 [#allocation2], 4
      %s22 = int_to_ptr.vmem [resolvable:$true] %s21
      %27 = dma.hbm_to_vmem [thread:$0]  %s20, 4096, %s22, [#allocation3], 1024, 1024, 64
    $region5: #{tpu_custom_call.1} parent=1 // pred_fallthru
      _
    // Predicated region
    $region6: #{tpu_custom_call.1} parent=1 // pred_check
      _
    $region7: #{tpu_custom_call.1} parent=1 // pred_check_branch
      %29 = sbr.rel (0) target = $region9
    $region8: #{tpu_custom_call.1} parent=1 // pred_region
      %s30 = sadd.s32 0, 0
      %s31 = smul.u32 4, %s30
      %p32 = scmp.lt.s32.totalorder %s31, 3
      %s33 = scalar_select %p32, %s31, 3
      %s34 = smul.addr %s33, 8
      %s35 = scalar_lea.vmem %s1, %s34
      %s36 = sadd.s32 0, 0
      %s37 = smul.u32 4, %s36
    $region9: #{tpu_custom_call.1} parent=1 // pred_fallthru
      _
    // Predicated region
    $region10: #{tpu_custom_call.1} parent=1 // pred_check
      _
    $region11: #{tpu_custom_call.1} parent=1 // pred_check_branch
      %39 = sbr.rel (0) target = $region13
    $region12: #{tpu_custom_call.1} parent=1 // pred_region
      %s40 = sadd.s32 0, 0
      %s41 = smul.u32 4, %s40
      %p42 = scmp.lt.s32.totalorder %s41, 3
      %s43 = scalar_select %p42, %s41, 3
      %s44 = smul.addr %s43, 8
      %s45 = scalar_lea.vmem %s2, %s44
      %s46 = sadd.s32 0, 0
      %s47 = smul.u32 4, %s46
    $region13: #{tpu_custom_call.1} parent=1 // pred_fallthru
      _
    // Predicated region
    $region14: #{tpu_custom_call.1} parent=1 // pred_check
      _
    $region15: #{tpu_custom_call.1} parent=1 // pred_check_branch
      %49 = sbr.rel (0) target = $region17
    $region16: #{tpu_custom_call.1} parent=1 // pred_region
      %51 = dma.done [#allocation3], 4096
    $region17: #{tpu_custom_call.1} parent=1 // pred_fallthru
      _
    %s52 = sadd.s32 0, 0
    %s53 = smul.u32 4, %s52
    %p54 = scmp.lt.s32.totalorder %s53, 3
    %s55 = scalar_select %p54, %s53, 3
    %s56 = smul.addr %s55, 8
    %s57 = scalar_lea.vmem %s1, %s56
    %s58 = sadd.s32 0, 0
    %s59 = smul.u32 4, %s58
    %p60 = scmp.lt.s32.totalorder %s59, 3
    %s61 = scalar_select %p60, %s59, 3
    %s62 = smul.addr %s61, 8
    %s63 = scalar_lea.vmem %s2, %s62
    %s64 = sadd.s32 0, 0
    %s65 = smul.u32 4, %s64
    %s66 = sadd.s32 0, 0
    %s67 = smul.u32 4, %s66
    %p68 = scmp.lt.s32.totalorder %s67, 3
    %s69 = scalar_select %p68, %s67, 3
    %s70 = smul.addr %s69, 8
    %s71 = scalar_lea.vmem %s1, %s70
    %s72 = sadd.s32 0, 0
    %s73 = smul.u32 4, %s72
    %s74 = sadd.s32 0, 0
    %s75 = smul.u32 4, %s74
    %p76 = scmp.lt.s32.totalorder %s75, 3
    %s77 = scalar_select %p76, %s75, 3
    %s78 = smul.addr %s77, 8
    %s79 = scalar_lea.vmem %s2, %s78
    %s80 = sadd.s32 0, 0
    %s81 = smul.u32 4, %s80
    %p82 = scmp.eq.s32.totalorder 0, 0
    // Predicated region
    $region18: #{tpu_custom_call.1} parent=1 // pred_check
      %p83 = pneg %p82
    $region19: #{tpu_custom_call.1} parent=1 // pred_check_branch
      %85 = sbr.rel (%p83) target = $region21
    $region20: #{tpu_custom_call.1} parent=1 // pred_region
      %86 = vst [vmem:[#allocation5] sm:$0xff] 0.0
      %87 = vst [vmem:[#allocation5 + $0x8] sm:$0xff] 0.0
      %88 = vst [vmem:[#allocation5 + $0x10] sm:$0xff] 0.0
      %89 = vst [vmem:[#allocation5 + $0x18] sm:$0xff] 0.0
      %90 = vst [vmem:[#allocation5 + $0x20] sm:$0xff] 0.0
      %91 = vst [vmem:[#allocation5 + $0x28] sm:$0xff] 0.0
      %92 = vst [vmem:[#allocation5 + $0x30] sm:$0xff] 0.0
      %93 = vst [vmem:[#allocation5 + $0x38] sm:$0xff] 0.0
    $region21: #{tpu_custom_call.1} parent=1 // pred_fallthru
      _
    %v94 = vld [vmem:[#allocation2] sm:$0xff]
    %v95 = vld [vmem:[#allocation2 + $0x8] sm:$0xff]
    %v96 = vld [vmem:[#allocation2 + $0x10] sm:$0xff]
    %v97 = vld [vmem:[#allocation2 + $0x18] sm:$0xff]
    %v98 = vld [vmem:[#allocation2 + $0x20] sm:$0xff]
    %v99 = vld [vmem:[#allocation2 + $0x28] sm:$0xff]
    %v100 = vld [vmem:[#allocation2 + $0x30] sm:$0xff]
    %v101 = vld [vmem:[#allocation2 + $0x38] sm:$0xff]
    %v102 = vld [vmem:[#allocation2 + $0x40] sm:$0xff]
    %v103 = vld [vmem:[#allocation2 + $0x48] sm:$0xff]
    %v104 = vld [vmem:[#allocation2 + $0x50] sm:$0xff]
    %v105 = vld [vmem:[#allocation2 + $0x58] sm:$0xff]
    %v106 = vld [vmem:[#allocation2 + $0x60] sm:$0xff]
    %v107 = vld [vmem:[#allocation2 + $0x68] sm:$0xff]
    %v108 = vld [vmem:[#allocation2 + $0x70] sm:$0xff]
    %v109 = vld [vmem:[#allocation2 + $0x78] sm:$0xff]
    %v110 = vld [vmem:[#allocation2 + $0x80] sm:$0xff]
    %v111 = vld [vmem:[#allocation2 + $0x88] sm:$0xff]
    %v112 = vld [vmem:[#allocation2 + $0x90] sm:$0xff]
    %v113 = vld [vmem:[#allocation2 + $0x98] sm:$0xff]
    %v114 = vld [vmem:[#allocation2 + $0xa0] sm:$0xff]
    %v115 = vld [vmem:[#allocation2 + $0xa8] sm:$0xff]
    %v116 = vld [vmem:[#allocation2 + $0xb0] sm:$0xff]
    %v117 = vld [vmem:[#allocation2 + $0xb8] sm:$0xff]
    %v118 = vld [vmem:[#allocation2 + $0xc0] sm:$0xff]
    %v119 = vld [vmem:[#allocation2 + $0xc8] sm:$0xff]
    %v120 = vld [vmem:[#allocation2 + $0xd0] sm:$0xff]
    %v121 = vld [vmem:[#allocation2 + $0xd8] sm:$0xff]
    %v122 = vld [vmem:[#allocation2 + $0xe0] sm:$0xff]
    %v123 = vld [vmem:[#allocation2 + $0xe8] sm:$0xff]
    %v124 = vld [vmem:[#allocation2 + $0xf0] sm:$0xff]
    %v125 = vld [vmem:[#allocation2 + $0xf8] sm:$0xff]
    %v126 = vld [vmem:[%s71] sm:$0xff]
    %v127 = vld [vmem:[%s71 + $0x8] sm:$0xff]
    %v128 = vld [vmem:[%s71 + $0x10] sm:$0xff]
    %v129 = vld [vmem:[%s71 + $0x18] sm:$0xff]
    %v130 = vld [vmem:[%s79] sm:$0xff]
    %v131 = vld [vmem:[%s79 + $0x8] sm:$0xff]
    %v132 = vld [vmem:[%s79 + $0x10] sm:$0xff]
    %v133 = vld [vmem:[%s79 + $0x18] sm:$0xff]
    %v134 = vmax.f32 %v94, %v95
    %v135 = vmax.f32 %v134, %v96
    %v136 = vmax.f32 %v135, %v97
    %v137 = vmax.f32 %v136, %v98
    %v138 = vmax.f32 %v137, %v99
    %v139 = vmax.f32 %v138, %v100
    %v140 = vmax.f32 %v139, %v101
    %141 = vmax.xlane.f32.xlu0 %v140
    %v142 = vpop.xlane.xlu0 %141
    %v143 = vmax.f32 %v102, %v103
    %v144 = vmax.f32 %v143, %v104
    %v145 = vmax.f32 %v144, %v105
    %v146 = vmax.f32 %v145, %v106
    %v147 = vmax.f32 %v146, %v107
    %v148 = vmax.f32 %v147, %v108
    %v149 = vmax.f32 %v148, %v109
    %150 = vmax.xlane.f32.xlu0 %v149
    %v151 = vpop.xlane.xlu0 %150
    %v152 = vmax.f32 %v110, %v111
    %v153 = vmax.f32 %v152, %v112
    %v154 = vmax.f32 %v153, %v113
    %v155 = vmax.f32 %v154, %v114
    %v156 = vmax.f32 %v155, %v115
    %v157 = vmax.f32 %v156, %v116
    %v158 = vmax.f32 %v157, %v117
    %159 = vmax.xlane.f32.xlu0 %v158
    %v160 = vpop.xlane.xlu0 %159
    %v161 = vmax.f32 %v118, %v119
    %v162 = vmax.f32 %v161, %v120
    %v163 = vmax.f32 %v162, %v121
    %v164 = vmax.f32 %v163, %v122
    %v165 = vmax.f32 %v164, %v123
    %v166 = vmax.f32 %v165, %v124
    %v167 = vmax.f32 %v166, %v125
    %168 = vmax.xlane.f32.xlu0 %v167
    %v169 = vpop.xlane.xlu0 %168
    %v170 = vsub.f32 %v94, %v142
    %v171 = vsub.f32 %v95, %v142
    %v172 = vsub.f32 %v96, %v142
    %v173 = vsub.f32 %v97, %v142
    %v174 = vsub.f32 %v98, %v142
    %v175 = vsub.f32 %v99, %v142
    %v176 = vsub.f32 %v100, %v142
    %v177 = vsub.f32 %v101, %v142
    %v178 = vsub.f32 %v102, %v151
    %v179 = vsub.f32 %v103, %v151
    %v180 = vsub.f32 %v104, %v151
    %v181 = vsub.f32 %v105, %v151
    %v182 = vsub.f32 %v106, %v151
    %v183 = vsub.f32 %v107, %v151
    %v184 = vsub.f32 %v108, %v151
    %v185 = vsub.f32 %v109, %v151
    %v186 = vsub.f32 %v110, %v160
    %v187 = vsub.f32 %v111, %v160
    %v188 = vsub.f32 %v112, %v160
    %v189 = vsub.f32 %v113, %v160
    %v190 = vsub.f32 %v114, %v160
    %v191 = vsub.f32 %v115, %v160
    %v192 = vsub.f32 %v116, %v160
    %v193 = vsub.f32 %v117, %v160
    %v194 = vsub.f32 %v118, %v169
    %v195 = vsub.f32 %v119, %v169
    %v196 = vsub.f32 %v120, %v169
    %v197 = vsub.f32 %v121, %v169
    %v198 = vsub.f32 %v122, %v169
    %v199 = vsub.f32 %v123, %v169
    %v200 = vsub.f32 %v124, %v169
    %v201 = vsub.f32 %v125, %v169
    %v202 = vmul.f32 %v170, 1.442695
    %v203 = vpow.pop %v202
    %v204 = vmul.f32 %v171, 1.442695
    %v205 = vpow.pop %v204
    %v206 = vmul.f32 %v172, 1.442695
    %v207 = vpow.pop %v206
    %v208 = vmul.f32 %v173, 1.442695
    %v209 = vpow.pop %v208
    %v210 = vmul.f32 %v174, 1.442695
    %v211 = vpow.pop %v210
    %v212 = vmul.f32 %v175, 1.442695
    %v213 = vpow.pop %v212
    %v214 = vmul.f32 %v176, 1.442695
    %v215 = vpow.pop %v214
    %v216 = vmul.f32 %v177, 1.442695
    %v217 = vpow.pop %v216
    %v218 = vmul.f32 %v178, 1.442695
    %v219 = vpow.pop %v218
    %v220 = vmul.f32 %v179, 1.442695
    %v221 = vpow.pop %v220
    %v222 = vmul.f32 %v180, 1.442695
    %v223 = vpow.pop %v222
    %v224 = vmul.f32 %v181, 1.442695
    %v225 = vpow.pop %v224
    %v226 = vmul.f32 %v182, 1.442695
    %v227 = vpow.pop %v226
    %v228 = vmul.f32 %v183, 1.442695
    %v229 = vpow.pop %v228
    %v230 = vmul.f32 %v184, 1.442695
    %v231 = vpow.pop %v230
    %v232 = vmul.f32 %v185, 1.442695
    %v233 = vpow.pop %v232
    %v234 = vmul.f32 %v186, 1.442695
    %v235 = vpow.pop %v234
    %v236 = vmul.f32 %v187, 1.442695
    %v237 = vpow.pop %v236
    %v238 = vmul.f32 %v188, 1.442695
    %v239 = vpow.pop %v238
    %v240 = vmul.f32 %v189, 1.442695
    %v241 = vpow.pop %v240
    %v242 = vmul.f32 %v190, 1.442695
    %v243 = vpow.pop %v242
    %v244 = vmul.f32 %v191, 1.442695
    %v245 = vpow.pop %v244
    %v246 = vmul.f32 %v192, 1.442695
    %v247 = vpow.pop %v246
    %v248 = vmul.f32 %v193, 1.442695
    %v249 = vpow.pop %v248
    %v250 = vmul.f32 %v194, 1.442695
    %v251 = vpow.pop %v250
    %v252 = vmul.f32 %v195, 1.442695
    %v253 = vpow.pop %v252
    %v254 = vmul.f32 %v196, 1.442695
    %v255 = vpow.pop %v254
    %v256 = vmul.f32 %v197, 1.442695
    %v257 = vpow.pop %v256
    %v258 = vmul.f32 %v198, 1.442695
    %v259 = vpow.pop %v258
    %v260 = vmul.f32 %v199, 1.442695
    %v261 = vpow.pop %v260
    %v262 = vmul.f32 %v200, 1.442695
    %v263 = vpow.pop %v262
    %v264 = vmul.f32 %v201, 1.442695
    %v265 = vpow.pop %v264
    %v266 = vadd.f32 %v203, %v205
    %v267 = vadd.f32 %v266, %v207
    %v268 = vadd.f32 %v267, %v209
    %v269 = vadd.f32 %v268, %v211
    %v270 = vadd.f32 %v269, %v213
    %v271 = vadd.f32 %v270, %v215
    %v272 = vadd.f32 %v271, %v217
    %273 = vadd.xlane.f32.xlu0 %v272
    %v274 = vpop.xlane.xlu0 %273
    %v275 = vadd.f32 %v219, %v221
    %v276 = vadd.f32 %v275, %v223
    %v277 = vadd.f32 %v276, %v225
    %v278 = vadd.f32 %v277, %v227
    %v279 = vadd.f32 %v278, %v229
    %v280 = vadd.f32 %v279, %v231
    %v281 = vadd.f32 %v280, %v233
    %282 = vadd.xlane.f32.xlu0 %v281
    %v283 = vpop.xlane.xlu0 %282
    %v284 = vadd.f32 %v235, %v237
    %v285 = vadd.f32 %v284, %v239
    %v286 = vadd.f32 %v285, %v241
    %v287 = vadd.f32 %v286, %v243
    %v288 = vadd.f32 %v287, %v245
    %v289 = vadd.f32 %v288, %v247
    %v290 = vadd.f32 %v289, %v249
    %291 = vadd.xlane.f32.xlu0 %v290
    %v292 = vpop.xlane.xlu0 %291
    %v293 = vadd.f32 %v251, %v253
    %v294 = vadd.f32 %v293, %v255
    %v295 = vadd.f32 %v294, %v257
    %v296 = vadd.f32 %v295, %v259
    %v297 = vadd.f32 %v296, %v261
    %v298 = vadd.f32 %v297, %v263
    %v299 = vadd.f32 %v298, %v265
    %300 = vadd.xlane.f32.xlu0 %v299
    %v301 = vpop.xlane.xlu0 %300
    %v302 = vlog2.pop %v274
    %v303 = vmul.f32 %v302, 0.6931472
    %v304 = vlog2.pop %v283
    %v305 = vmul.f32 %v304, 0.6931472
    %v306 = vlog2.pop %v292
    %v307 = vmul.f32 %v306, 0.6931472
    %v308 = vlog2.pop %v301
    %v309 = vmul.f32 %v308, 0.6931472
    %v310 = vsub.f32 %v274, %v203
    %v311 = vsub.f32 %v274, %v205
    %v312 = vsub.f32 %v274, %v207
    %v313 = vsub.f32 %v274, %v209
    %v314 = vsub.f32 %v274, %v211
    %v315 = vsub.f32 %v274, %v213
    %v316 = vsub.f32 %v274, %v215
    %v317 = vsub.f32 %v274, %v217
    %v318 = vsub.f32 %v283, %v219
    %v319 = vsub.f32 %v283, %v221
    %v320 = vsub.f32 %v283, %v223
    %v321 = vsub.f32 %v283, %v225
    %v322 = vsub.f32 %v283, %v227
    %v323 = vsub.f32 %v283, %v229
    %v324 = vsub.f32 %v283, %v231
    %v325 = vsub.f32 %v283, %v233
    %v326 = vsub.f32 %v292, %v235
    %v327 = vsub.f32 %v292, %v237
    %v328 = vsub.f32 %v292, %v239
    %v329 = vsub.f32 %v292, %v241
    %v330 = vsub.f32 %v292, %v243
    %v331 = vsub.f32 %v292, %v245
    %v332 = vsub.f32 %v292, %v247
    %v333 = vsub.f32 %v292, %v249
    %v334 = vsub.f32 %v301, %v251
    %v335 = vsub.f32 %v301, %v253
    %v336 = vsub.f32 %v301, %v255
    %v337 = vsub.f32 %v301, %v257
    %v338 = vsub.f32 %v301, %v259
    %v339 = vsub.f32 %v301, %v261
    %v340 = vsub.f32 %v301, %v263
    %v341 = vsub.f32 %v301, %v265
    %v342 = vlog2.pop %v310
    %v343 = vmul.f32 %v342, 0.6931472
    %v344 = vlog2.pop %v311
    %v345 = vmul.f32 %v344, 0.6931472
    %v346 = vlog2.pop %v312
    %v347 = vmul.f32 %v346, 0.6931472
    %v348 = vlog2.pop %v313
    %v349 = vmul.f32 %v348, 0.6931472
    %v350 = vlog2.pop %v314
    %v351 = vmul.f32 %v350, 0.6931472
    %v352 = vlog2.pop %v315
    %v353 = vmul.f32 %v352, 0.6931472
    %v354 = vlog2.pop %v316
    %v355 = vmul.f32 %v354, 0.6931472
    %v356 = vlog2.pop %v317
    %v357 = vmul.f32 %v356, 0.6931472
    %v358 = vlog2.pop %v318
    %v359 = vmul.f32 %v358, 0.6931472
    %v360 = vlog2.pop %v319
    %v361 = vmul.f32 %v360, 0.6931472
    %v362 = vlog2.pop %v320
    %v363 = vmul.f32 %v362, 0.6931472
    %v364 = vlog2.pop %v321
    %v365 = vmul.f32 %v364, 0.6931472
    %v366 = vlog2.pop %v322
    %v367 = vmul.f32 %v366, 0.6931472
    %v368 = vlog2.pop %v323
    %v369 = vmul.f32 %v368, 0.6931472
    %v370 = vlog2.pop %v324
    %v371 = vmul.f32 %v370, 0.6931472
    %v372 = vlog2.pop %v325
    %v373 = vmul.f32 %v372, 0.6931472
    %v374 = vlog2.pop %v326
    %v375 = vmul.f32 %v374, 0.6931472
    %v376 = vlog2.pop %v327
    %v377 = vmul.f32 %v376, 0.6931472
    %v378 = vlog2.pop %v328
    %v379 = vmul.f32 %v378, 0.6931472
    %v380 = vlog2.pop %v329
    %v381 = vmul.f32 %v380, 0.6931472
    %v382 = vlog2.pop %v330
    %v383 = vmul.f32 %v382, 0.6931472
    %v384 = vlog2.pop %v331
    %v385 = vmul.f32 %v384, 0.6931472
    %v386 = vlog2.pop %v332
    %v387 = vmul.f32 %v386, 0.6931472
    %v388 = vlog2.pop %v333
    %v389 = vmul.f32 %v388, 0.6931472
    %v390 = vlog2.pop %v334
    %v391 = vmul.f32 %v390, 0.6931472
    %v392 = vlog2.pop %v335
    %v393 = vmul.f32 %v392, 0.6931472
    %v394 = vlog2.pop %v336
    %v395 = vmul.f32 %v394, 0.6931472
    %v396 = vlog2.pop %v337
    %v397 = vmul.f32 %v396, 0.6931472
    %v398 = vlog2.pop %v338
    %v399 = vmul.f32 %v398, 0.6931472
    %v400 = vlog2.pop %v339
    %v401 = vmul.f32 %v400, 0.6931472
    %v402 = vlog2.pop %v340
    %v403 = vmul.f32 %v402, 0.6931472
    %v404 = vlog2.pop %v341
    %v405 = vmul.f32 %v404, 0.6931472
    %v406 = vsub.f32 %v343, %v303
    %v407 = vsub.f32 %v345, %v303
    %v408 = vsub.f32 %v347, %v303
    %v409 = vsub.f32 %v349, %v303
    %v410 = vsub.f32 %v351, %v303
    %v411 = vsub.f32 %v353, %v303
    %v412 = vsub.f32 %v355, %v303
    %v413 = vsub.f32 %v357, %v303
    %v414 = vsub.f32 %v359, %v305
    %v415 = vsub.f32 %v361, %v305
    %v416 = vsub.f32 %v363, %v305
    %v417 = vsub.f32 %v365, %v305
    %v418 = vsub.f32 %v367, %v305
    %v419 = vsub.f32 %v369, %v305
    %v420 = vsub.f32 %v371, %v305
    %v421 = vsub.f32 %v373, %v305
    %v422 = vsub.f32 %v375, %v307
    %v423 = vsub.f32 %v377, %v307
    %v424 = vsub.f32 %v379, %v307
    %v425 = vsub.f32 %v381, %v307
    %v426 = vsub.f32 %v383, %v307
    %v427 = vsub.f32 %v385, %v307
    %v428 = vsub.f32 %v387, %v307
    %v429 = vsub.f32 %v389, %v307
    %v430 = vsub.f32 %v391, %v309
    %v431 = vsub.f32 %v393, %v309
    %v432 = vsub.f32 %v395, %v309
    %v433 = vsub.f32 %v397, %v309
    %v434 = vsub.f32 %v399, %v309
    %v435 = vsub.f32 %v401, %v309
    %v436 = vsub.f32 %v403, %v309
    %v437 = vsub.f32 %v405, %v309
    %v438 = vmax.f32 %v406, -100.0
    %v439 = vmax.f32 %v407, -100.0
    %v440 = vmax.f32 %v408, -100.0
    %v441 = vmax.f32 %v409, -100.0
    %v442 = vmax.f32 %v410, -100.0
    %v443 = vmax.f32 %v411, -100.0
    %v444 = vmax.f32 %v412, -100.0
    %v445 = vmax.f32 %v413, -100.0
    %v446 = vmax.f32 %v414, -100.0
    %v447 = vmax.f32 %v415, -100.0
    %v448 = vmax.f32 %v416, -100.0
    %v449 = vmax.f32 %v417, -100.0
    %v450 = vmax.f32 %v418, -100.0
    %v451 = vmax.f32 %v419, -100.0
    %v452 = vmax.f32 %v420, -100.0
    %v453 = vmax.f32 %v421, -100.0
    %v454 = vmax.f32 %v422, -100.0
    %v455 = vmax.f32 %v423, -100.0
    %v456 = vmax.f32 %v424, -100.0
    %v457 = vmax.f32 %v425, -100.0
    %v458 = vmax.f32 %v426, -100.0
    %v459 = vmax.f32 %v427, -100.0
    %v460 = vmax.f32 %v428, -100.0
    %v461 = vmax.f32 %v429, -100.0
    %v462 = vmax.f32 %v430, -100.0
    %v463 = vmax.f32 %v431, -100.0
    %v464 = vmax.f32 %v432, -100.0
    %v465 = vmax.f32 %v433, -100.0
    %v466 = vmax.f32 %v434, -100.0
    %v467 = vmax.f32 %v435, -100.0
    %v468 = vmax.f32 %v436, -100.0
    %v469 = vmax.f32 %v437, -100.0
    %v470 = vsub.f32 %v126, %v142
    %v471 = vsub.f32 %v127, %v151
    %v472 = vsub.f32 %v128, %v160
    %v473 = vsub.f32 %v129, %v169
    %v474 = vmul.f32 %v470, 1.442695
    %v475 = vpow.pop %v474
    %v476 = vmul.f32 %v471, 1.442695
    %v477 = vpow.pop %v476
    %v478 = vmul.f32 %v472, 1.442695
    %v479 = vpow.pop %v478
    %v480 = vmul.f32 %v473, 1.442695
    %v481 = vpow.pop %v480
    %v482 = vsub.f32 %v470, %v303
    %v483 = vsub.f32 %v471, %v305
    %v484 = vsub.f32 %v472, %v307
    %v485 = vsub.f32 %v473, %v309
    %v486 = vmax.f32 %v482, -100.0
    %v487 = vmax.f32 %v483, -100.0
    %v488 = vmax.f32 %v484, -100.0
    %v489 = vmax.f32 %v485, -100.0
    %v490 = vsub.f32 %v274, %v475
    %v491 = vsub.f32 %v283, %v477
    %v492 = vsub.f32 %v292, %v479
    %v493 = vsub.f32 %v301, %v481
    %v494 = vlog2.pop %v490
    %v495 = vmul.f32 %v494, 0.6931472
    %v496 = vlog2.pop %v491
    %v497 = vmul.f32 %v496, 0.6931472
    %v498 = vlog2.pop %v492
    %v499 = vmul.f32 %v498, 0.6931472
    %v500 = vlog2.pop %v493
    %v501 = vmul.f32 %v500, 0.6931472
    %v502 = vsub.f32 %v495, %v303
    %v503 = vsub.f32 %v497, %v305
    %v504 = vsub.f32 %v499, %v307
    %v505 = vsub.f32 %v501, %v309
    %v506 = vmax.f32 %v502, -100.0
    %v507 = vmax.f32 %v503, -100.0
    %v508 = vmax.f32 %v504, -100.0
    %v509 = vmax.f32 %v505, -100.0
    %v510 = vsub.f32 0.0, %v130
    %v511 = vsub.f32 0.0, %v131
    %v512 = vsub.f32 0.0, %v132
    %v513 = vsub.f32 0.0, %v133
    %515 = vset.pattern.permute.xlu0 0
    %516 = vperm.xlu0 %515, %v510
    %v517 = vpop.permute.xlu0 %516
    %520 = vset.pattern.permute.xlu0 0
    %521 = vperm.xlu0 %520, %v511
    %v522 = vpop.permute.xlu0 %521
    %525 = vset.pattern.permute.xlu0 0
    %526 = vperm.xlu0 %525, %v512
    %v527 = vpop.permute.xlu0 %526
    %530 = vset.pattern.permute.xlu0 0
    %531 = vperm.xlu0 %530, %v513
    %v532 = vpop.permute.xlu0 %531
    %v534 = vmul.f32 %v517, %v438
    %v535 = vmul.f32 %v517, %v439
    %v536 = vmul.f32 %v517, %v440
    %v537 = vmul.f32 %v517, %v441
    %v538 = vmul.f32 %v517, %v442
    %v539 = vmul.f32 %v517, %v443
    %v540 = vmul.f32 %v517, %v444
    %v541 = vmul.f32 %v517, %v445
    %v542 = vmul.f32 %v522, %v446
    %v543 = vmul.f32 %v522, %v447
    %v544 = vmul.f32 %v522, %v448
    %v545 = vmul.f32 %v522, %v449
    %v546 = vmul.f32 %v522, %v450
    %v547 = vmul.f32 %v522, %v451
    %v548 = vmul.f32 %v522, %v452
    %v549 = vmul.f32 %v522, %v453
    %v550 = vmul.f32 %v527, %v454
    %v551 = vmul.f32 %v527, %v455
    %v552 = vmul.f32 %v527, %v456
    %v553 = vmul.f32 %v527, %v457
    %v554 = vmul.f32 %v527, %v458
    %v555 = vmul.f32 %v527, %v459
    %v556 = vmul.f32 %v527, %v460
    %v557 = vmul.f32 %v527, %v461
    %v558 = vmul.f32 %v532, %v462
    %v559 = vmul.f32 %v532, %v463
    %v560 = vmul.f32 %v532, %v464
    %v561 = vmul.f32 %v532, %v465
    %v562 = vmul.f32 %v532, %v466
    %v563 = vmul.f32 %v532, %v467
    %v564 = vmul.f32 %v532, %v468
    %v565 = vmul.f32 %v532, %v469
    %v566 = vadd.f32 %v534, %v542
    %v567 = vadd.f32 %v566, %v550
    %v568 = vadd.f32 %v567, %v558
    %v569 = vadd.f32 %v535, %v543
    %v570 = vadd.f32 %v569, %v551
    %v571 = vadd.f32 %v570, %v559
    %v572 = vadd.f32 %v536, %v544
    %v573 = vadd.f32 %v572, %v552
    %v574 = vadd.f32 %v573, %v560
    %v575 = vadd.f32 %v537, %v545
    %v576 = vadd.f32 %v575, %v553
    %v577 = vadd.f32 %v576, %v561
    %v578 = vadd.f32 %v538, %v546
    %v579 = vadd.f32 %v578, %v554
    %v580 = vadd.f32 %v579, %v562
    %v581 = vadd.f32 %v539, %v547
    %v582 = vadd.f32 %v581, %v555
    %v583 = vadd.f32 %v582, %v563
    %v584 = vadd.f32 %v540, %v548
    %v585 = vadd.f32 %v584, %v556
    %v586 = vadd.f32 %v585, %v564
    %v587 = vadd.f32 %v541, %v549
    %v588 = vadd.f32 %v587, %v557
    %v589 = vadd.f32 %v588, %v565
    %v590 = vsub.f32 %v506, %v486
    %v591 = vsub.f32 %v507, %v487
    %v592 = vsub.f32 %v508, %v488
    %v593 = vsub.f32 %v509, %v489
    %v594 = vmul.f32 %v130, %v590
    %v595 = vmul.f32 %v131, %v591
    %v596 = vmul.f32 %v132, %v592
    %v597 = vmul.f32 %v133, %v593
    %vm598 = vcmask 7168
    %v599 = vsel %vm598, %v594, 0.0
    %v600 = vsel %vm598, %v595, 0.0
    %v601 = vadd.f32 %v599, %v600
    %v602 = vsel %vm598, %v596, 0.0
    %v603 = vadd.f32 %v601, %v602
    %v604 = vsel %vm598, %v597, 0.0
    %v605 = vadd.f32 %v603, %v604
    %v606 = vlaneseq
    %v607 = vand.u32 %v606, 127
    %v608 = vadd.s32 %v607, 128
    %v609 = vadd.s32 %v607, 256
    %v610 = vadd.s32 %v607, 384
    %v611 = vadd.s32 %v607, 512
    %v612 = vadd.s32 %v607, 640
    %v613 = vadd.s32 %v607, 768
    %v614 = vadd.s32 %v607, 896
    %v615 = vld [vmem:[#allocation5] sm:$0xff]
    %v616 = vld [vmem:[#allocation5 + $0x8] sm:$0xff]
    %v617 = vld [vmem:[#allocation5 + $0x10] sm:$0xff]
    %v618 = vld [vmem:[#allocation5 + $0x18] sm:$0xff]
    %v619 = vld [vmem:[#allocation5 + $0x20] sm:$0xff]
    %v620 = vld [vmem:[#allocation5 + $0x28] sm:$0xff]
    %v621 = vld [vmem:[#allocation5 + $0x30] sm:$0xff]
    %v622 = vld [vmem:[#allocation5 + $0x38] sm:$0xff]
    %vm623 = vcmp.eq.s32.totalorder %v607, 0
    %vm624 = vcmp.eq.s32.totalorder %v608, 0
    %vm625 = vcmp.eq.s32.totalorder %v609, 0
    %vm626 = vcmp.eq.s32.totalorder %v610, 0
    %vm627 = vcmp.eq.s32.totalorder %v611, 0
    %vm628 = vcmp.eq.s32.totalorder %v612, 0
    %vm629 = vcmp.eq.s32.totalorder %v613, 0
    %vm630 = vcmp.eq.s32.totalorder %v614, 0
    %632 = vset.pattern.permute.xlu0 0
    %633 = vperm.xlu0 %632, %v605
    %v634 = vpop.permute.xlu0 %633
    %v636 = vsel %vm623, %v634, 0.0
    %v637 = vsel %vm624, %v634, 0.0
    %v638 = vsel %vm625, %v634, 0.0
    %v639 = vsel %vm626, %v634, 0.0
    %v640 = vsel %vm627, %v634, 0.0
    %v641 = vsel %vm628, %v634, 0.0
    %v642 = vsel %vm629, %v634, 0.0
    %v643 = vsel %vm630, %v634, 0.0
    %v644 = vadd.f32 %v568, %v636
    %v645 = vadd.f32 %v571, %v637
    %v646 = vadd.f32 %v574, %v638
    %v647 = vadd.f32 %v577, %v639
    %v648 = vadd.f32 %v580, %v640
    %v649 = vadd.f32 %v583, %v641
    %v650 = vadd.f32 %v586, %v642
    %v651 = vadd.f32 %v589, %v643
    %v652 = vadd.f32 %v615, %v644
    %v653 = vadd.f32 %v616, %v645
    %v654 = vadd.f32 %v617, %v646
    %v655 = vadd.f32 %v618, %v647
    %v656 = vadd.f32 %v619, %v648
    %v657 = vadd.f32 %v620, %v649
    %v658 = vadd.f32 %v621, %v650
    %v659 = vadd.f32 %v622, %v651
    %660 = vst [vmem:[#allocation5] sm:$0xff] %v652
    %661 = vst [vmem:[#allocation5 + $0x8] sm:$0xff] %v653
    %662 = vst [vmem:[#allocation5 + $0x10] sm:$0xff] %v654
    %663 = vst [vmem:[#allocation5 + $0x18] sm:$0xff] %v655
    %664 = vst [vmem:[#allocation5 + $0x20] sm:$0xff] %v656
    %665 = vst [vmem:[#allocation5 + $0x28] sm:$0xff] %v657
    %666 = vst [vmem:[#allocation5 + $0x30] sm:$0xff] %v658
    %667 = vst [vmem:[#allocation5 + $0x38] sm:$0xff] %v659
    // Predicated region
    $region22: #{tpu_custom_call.1} parent=1 // pred_check
      _
    $region23: #{tpu_custom_call.1} parent=1 // pred_check_branch
      %669 = sbr.rel (0) target = $region25
    $region24: #{tpu_custom_call.1} parent=1 // pred_region
      %671 = vsyncadd [#allocation4], 0
      %s673 = sshll.u32 [#allocation5], 4
      %s674 = int_to_ptr.vmem [resolvable:$true] %s673
      %s675 = sshll.u32 %s3, 4
      %s676 = int_to_ptr.hbm [resolvable:$true] %s675
      %678 = dma.vmem_to_hbm [thread:$0]  %s674, 1024, %s676, [#allocation4]
    $region25: #{tpu_custom_call.1} parent=1 // pred_fallthru
      _
    // Predicated region
    $region26: #{tpu_custom_call.1} parent=1 // pred_check
      _
    $region27: #{tpu_custom_call.1} parent=1 // pred_check_branch
      %680 = sbr.rel (0) target = $region29
    $region28: #{tpu_custom_call.1} parent=1 // pred_region
      %682 = dma.done [#allocation4], 1024
    $region29: #{tpu_custom_call.1} parent=1 // pred_fallthru
      _
    %683 = vsyncpa [#allocation3], 1
    %684 = vsyncpa [#allocation4], 1

</llo_original>
